<compile_context>
chip_gen: v7x
topology: tpu7x:2x2x1
jax: 0.10.0
libtpu: 0.0.40
codegen_flags: <defaults>
</compile_context>

<pallas_src>
import math

import jax
import jax.numpy as jnp
from jax.experimental import pallas as pl
from jax.experimental.pallas import tpu as pltpu


# ----------------------------- Pallas kernel --------------------------------

def _generator_kernel(x_ref, w_ref, b_ref, o_ref):
    # x: (TM, D)  w: (D, V)  b: (1, V)  ->  o: (TM, V) = log_softmax(x @ w + b)
    x = x_ref[...].astype(jnp.bfloat16)          # MXU-native inputs
    w = w_ref[...].astype(jnp.bfloat16)
    y = jnp.dot(x, w, preferred_element_type=jnp.float32)   # f32 accumulate
    y = y + b_ref[...]                                       # (TM, V) f32
    # numerically stable log-softmax along the lane (vocab) axis, f32 math
    m = jnp.max(y, axis=-1, keepdims=True)
    z = y - m
    lse = jnp.log(jnp.sum(jnp.exp(z), axis=-1, keepdims=True))
    o_ref[...] = (z - lse).astype(o_ref.dtype)


# ------------------------------- wrapper -------------------------------------

def _pick_row_tile(m_rows, tm_max=256):
    """Row tile: multiple of 8 sublanes, capped for v7x VMEM, >=2 grid steps when possible."""
    m8 = ((m_rows + 7) // 8) * 8
    tm = min(tm_max, m8)
    if m8 >= 16 and tm >= m8:        # give the v7x megacore at least 2 grid steps
        tm = max(8, ((m8 // 2 + 7) // 8) * 8)
    return tm


def generator_forward(w, b, x, *, tm_max=256):
    """log_softmax(x @ w + b, axis=-1) for x of shape (..., d_model)."""
    *lead, D = x.shape
    V = w.shape[1]
    M = math.prod(lead) if lead else 1
    x2d = x.reshape(M, D)

    tm = _pick_row_tile(M, tm_max)
    Mp = pl.cdiv(M, tm) * tm
    if Mp != M:                                   # pad rows to a whole number of tiles
        x2d = jnp.pad(x2d, ((0, Mp - M), (0, 0)))

    out = pl.pallas_call(
        _generator_kernel,
        grid=(Mp // tm,),
        out_shape=jax.ShapeDtypeStruct((Mp, V), x.dtype),
        in_specs=[
            pl.BlockSpec((tm, D), lambda i: (i, 0)),   # activation row-tile (pipelined)
            pl.BlockSpec((D, V), lambda i: (0, 0)),    # weight resident across grid
            pl.BlockSpec((1, V), lambda i: (0, 0)),    # bias, lane-dense (1, V)
        ],
        out_specs=pl.BlockSpec((tm, V), lambda i: (i, 0)),
        compiler_params=pltpu.CompilerParams(
            dimension_semantics=("parallel",),
            vmem_limit_bytes=64 * 1024 * 1024,
        ),
    )(x2d, w, b.reshape(1, V))

    return out[:M].reshape(*lead, V)


# ------------------------- pure-JAX reference ---------------------------------

def _ref_generator(w, b, x):
    y = jnp.matmul(x, w, precision=jax.lax.Precision.HIGHEST) + b
    return jax.nn.log_softmax(y, axis=-1)


# ---------------------------------- main ---------------------------------------

if __name__ == "__main__":
    key = jax.random.PRNGKey(0)
    # small but lane-dense shapes: batch=2, seq=8, d_model=128, vocab=256
    B, T, D, V = 2, 8, 128, 256

    kx, kw, kb = jax.random.split(key, 3)
    x = jax.random.normal(kx, (B, T, D), jnp.float32)
    w = (0.05 * jax.random.normal(kw, (D, V))).astype(jnp.float32)
    b = (0.05 * jax.random.normal(kb, (V,))).astype(jnp.float32)

    out = generator_forward(w, b, x)
    jax.block_until_ready(out)

    ref = _ref_generator(w, b, x)
    assert out.shape == (B, T, V)
    # bf16 MXU inputs (f32 accumulate) vs f32-HIGHEST reference
    assert jnp.allclose(out, ref, atol=2e-2, rtol=2e-2), float(jnp.max(jnp.abs(out - ref)))
    # log-probabilities must exponentiate to a valid distribution
    assert jnp.allclose(jnp.sum(jnp.exp(out), axis=-1), 1.0, atol=1e-3)

    print("KERNEL_OK")
</pallas_src>

<mosaic_0001>
module attributes {stable_mosaic.version = 11 : i64} {
  func.func @_generator_kernel(%arg0: i32, %arg1: memref<8x128xf32, #tpu.memory_space<vmem>>, %arg2: memref<128x256xf32, #tpu.memory_space<vmem>>, %arg3: memref<1x256xf32, #tpu.memory_space<vmem>>, %arg4: memref<8x256xf32, #tpu.memory_space<vmem>>) attributes {dimension_semantics = [#tpu.dimension_semantics<parallel>], iteration_bounds = array<i64: 2>, scalar_prefetch = 0 : i64, scratch_operands = 0 : i64, tpu.core_type = #tpu.core_type<tc>, window_params = [{transform_indices = @transform_0, window_bounds = array<i64: 8, 128>}, {pipeline_mode = #tpu.pipeline_mode<synchronous>, transform_indices = @transform_1, window_bounds = array<i64: 128, 256>}, {pipeline_mode = #tpu.pipeline_mode<synchronous>, transform_indices = @transform_2, window_bounds = array<i64: 1, 256>}, {transform_indices = @transform_3, window_bounds = array<i64: 8, 256>}]} {
    %c0 = arith.constant 0 : index
    %c0_0 = arith.constant 0 : index
    %0 = vector.load %arg1[%c0, %c0_0] : memref<8x128xf32, #tpu.memory_space<vmem>>, vector<8x128xf32>
    %1 = arith.truncf %0 : vector<8x128xf32> to vector<8x128xbf16>
    %c0_1 = arith.constant 0 : index
    %c0_2 = arith.constant 0 : index
    %2 = vector.load %arg2[%c0_1, %c0_2] : memref<128x256xf32, #tpu.memory_space<vmem>>, vector<128x256xf32>
    %3 = arith.truncf %2 : vector<128x256xf32> to vector<128x256xbf16>
    %cst = arith.constant dense<0.000000e+00> : vector<8x256xf32>
    %4 = tpu.matmul %1, %3, %cst {dimension_numbers = #tpu.dot_dimension_numbers<[1], [0], [0], [1], [0, 0, 1, 1], [], []>} : vector<8x128xbf16>, vector<128x256xbf16>, vector<8x256xf32> -> vector<8x256xf32>
    %c0_3 = arith.constant 0 : index
    %c0_4 = arith.constant 0 : index
    %5 = vector.load %arg3[%c0_3, %c0_4] : memref<1x256xf32, #tpu.memory_space<vmem>>, vector<1x256xf32>
    %6 = vector.broadcast %5 : vector<1x256xf32> to vector<8x256xf32>
    %7 = arith.addf %4, %6 : vector<8x256xf32>
    %cst_5 = arith.constant dense<0xFF800000> : vector<8xf32>
    %8 = vector.multi_reduction <maximumf>, %7, %cst_5 [1] : vector<8x256xf32> to vector<8xf32>
    %9 = vector.shape_cast %8 : vector<8xf32> to vector<8x1xf32>
    %10 = vector.broadcast %9 : vector<8x1xf32> to vector<8x256xf32>
    %11 = arith.subf %7, %10 : vector<8x256xf32>
    %12 = math.exp %11 : vector<8x256xf32>
    %cst_6 = arith.constant dense<0.000000e+00> : vector<8xf32>
    %13 = vector.multi_reduction <add>, %12, %cst_6 [1] : vector<8x256xf32> to vector<8xf32>
    %14 = vector.shape_cast %13 : vector<8xf32> to vector<8x1xf32>
    %15 = math.log %14 : vector<8x1xf32>
    %16 = vector.broadcast %15 : vector<8x1xf32> to vector<8x256xf32>
    %17 = arith.subf %11, %16 : vector<8x256xf32>
    %c0_7 = arith.constant 0 : index
    %c0_8 = arith.constant 0 : index
    %18 = vector.load %arg4[%c0_7, %c0_8] : memref<8x256xf32, #tpu.memory_space<vmem>>, vector<8x256xf32>
    tpu.vector_store %arg4[%c0_7, %c0_8], %17 {strides = array<i32>} : memref<8x256xf32, #tpu.memory_space<vmem>>, vector<8x256xf32>,
    return
  }
  func.func @transform_0(%arg0: i32) -> (i32, i32) {
    %c0_i32 = arith.constant 0 : i32
    %c0_i32_0 = arith.constant 0 : i32
    return %arg0, %c0_i32 : i32, i32
  }
  func.func @transform_1(%arg0: i32) -> (i32, i32) {
    %c0_i32 = arith.constant 0 : i32
    %c0_i32_0 = arith.constant 0 : i32
    %c0_i32_1 = arith.constant 0 : i32
    return %c0_i32, %c0_i32_0 : i32, i32
  }
  func.func @transform_2(%arg0: i32) -> (i32, i32) {
    %c0_i32 = arith.constant 0 : i32
    %c0_i32_0 = arith.constant 0 : i32
    %c0_i32_1 = arith.constant 0 : i32
    return %c0_i32, %c0_i32_0 : i32, i32
  }
  func.func @transform_3(%arg0: i32) -> (i32, i32) {
    %c0_i32 = arith.constant 0 : i32
    %c0_i32_0 = arith.constant 0 : i32
    return %arg0, %c0_i32 : i32, i32
  }
}

</mosaic_0001>

<llo_original>
// kernel: tpu_custom_call.1
$region0: #{tpu_custom_call.1}
  #allocation0 [shape = 'u32[]', space=smem, size = 0x4, offset = 0x4, fixed_abs, tag = 'smem constant byte address 0x4 - core index']
  #allocation1 [shape = 'u32[144,128]{1,0:T(1,128)}', space=vmem, size = 0x12000, scoped, tag = 'internal scratch']
  %s0 = inlined_call_operand.hbm [shape: f32[16,128], index: 0, kind: input, shape index: {}]
  %s1 = inlined_call_operand.hbm [shape: f32[128,256], index: 1, kind: input, shape index: {}]
  %s2 = inlined_call_operand.hbm [shape: f32[1,256], index: 2, kind: input, shape index: {}]
  %s3 = inlined_call_operand.hbm [shape: f32[16,256], index: 3, kind: output, shape index: {}]
  %s4 = sld [smem:[#allocation0]]
  $region57: #{tpu_custom_call.1} parent=0
    _
  %s6 = ssub.s32 1, %s4
  %s7 = scalar_select 0, %s6, %s4
  $region1: #{tpu_custom_call.1} parent=0
    #allocation2 [shape = 'u8[8192]{0}', space=vmem, size = 0x2000, scoped, tag = 'input window, operand 0']
    #allocation3 [shape = 's32[2]{0}', space=sflag, size = 0x8, scoped, tag = 'scoped memory for tpu_custom_call.1']
    #allocation4 [shape = 's32[2]{0}', space=sflag, size = 0x8, scoped, tag = 'scoped memory for tpu_custom_call.1']
    #allocation5 [shape = 'u8[131072]{0}', space=vmem, size = 0x20000, scoped, tag = 'input window, operand 1, single buffered']
    #allocation6 [shape = 's32[1]{0}', space=sflag, size = 0x4, scoped, tag = 'scoped memory for tpu_custom_call.1']
    #allocation7 [shape = 'u8[1024]{0}', space=vmem, size = 0x400, scoped, tag = 'input window, operand 2, single buffered']
    #allocation8 [shape = 'u8[16384]{0}', space=vmem, size = 0x4000, scoped, tag = 'output window, operand 0']
    %8 = vsyncpa [#allocation3], 0
    %s9 = scalar_lea.sflag [#allocation3], 1
    %10 = vsyncpa %s9, 0
    %11 = vsyncpa [#allocation6], 0
    %12 = vsyncpa [#allocation4], 0
    %s13 = scalar_lea.sflag [#allocation4], 1
    %14 = vsyncpa %s13, 0
    loop: start=0, step=1, limit=4
    $region2: #{tpu_custom_call.1} parent=1 // loop_pre_header
      _
    $region3: #{tpu_custom_call.1} parent=1 // loop_header
      %s16 = sphi 0, %s20
      %p17 = scmp.ge.s32.totalorder %s16, 4
      %s26 = sphi 0, %s28
      %s29 = sphi 0, %s26
      %s30 = sphi 0, %s29
      %s46 = sphi 0, %s30
      %s50 = sphi 0, %s50
      %s52 = sphi 0, %s50
      %s53 = sphi 0, %s52
      %s67 = sphi 0, %s53
      %s71 = sphi 0, %s71
      %s73 = sphi 0, %s71
      %s74 = sphi 0, %s73
      %s88 = sphi 0, %s74
      %s94 = sphi 0, %s96
      %s97 = sphi 0, %s94
      %s98 = sphi 0, %s97
      %s114 = sphi 0, %s98
    $region4: #{tpu_custom_call.1} parent=1 // loop_header_branch
      %19 = sbr.rel (%p17) target = $region8
    $region5: #{tpu_custom_call.1} parent=1 // loop_body
      %s21 = ssub.s32 %s16, 1
      %s22 = ssub.s32 %s16, 2
      %s23 = sadd.s32 %s16, 1
      %s24 = ssub.s32 %s16, %s23
      %p25 = scmp.eq.s32.totalorder %s24, 0
      %s27 = sadd.s32 %s26, 1
      %s28 = scalar_select %p25, %s26, %s27
      %p31 = pneg %p25
      %p32 = scmp.eq.s32.totalorder %s16, 1
      %p33 = por %p31, %p32
      %p34 = scmp.ne.s32.totalorder %s26, %s29
      %p35 = scmp.eq.s32.totalorder %s16, 0
      %p36 = por %p34, %p35
      %p37 = scmp.ne.s32.totalorder %s26, %s29
      %p38 = scmp.eq.s32.totalorder %s21, 1
      %p39 = por %p37, %p38
      %p40 = scmp.ne.s32.totalorder %s29, %s30
      %p41 = scmp.eq.s32.totalorder %s21, 0
      %p42 = por %p40, %p41
      %p43 = scmp.ne.s32.totalorder %s29, %s30
      %p44 = scmp.eq.s32.totalorder %s22, 1
      %p45 = por %p43, %p44
      %p47 = scmp.ne.s32.totalorder %s30, %s46
      %p48 = scmp.eq.s32.totalorder %s22, 0
      %p49 = por %p47, %p48
      %s51 = sadd.s32 %s50, 1
      %p54 = scmp.eq.s32.totalorder %s16, 1
      %p55 = scmp.ne.s32.totalorder %s50, %s52
      %p56 = scmp.eq.s32.totalorder %s16, 0
      %p57 = por %p55, %p56
      %p58 = scmp.ne.s32.totalorder %s50, %s52
      %p59 = scmp.eq.s32.totalorder %s21, 1
      %p60 = por %p58, %p59
      %p61 = scmp.ne.s32.totalorder %s52, %s53
      %p62 = scmp.eq.s32.totalorder %s21, 0
      %p63 = por %p61, %p62
      %p64 = scmp.ne.s32.totalorder %s52, %s53
      %p65 = scmp.eq.s32.totalorder %s22, 1
      %p66 = por %p64, %p65
      %p68 = scmp.ne.s32.totalorder %s53, %s67
      %p69 = scmp.eq.s32.totalorder %s22, 0
      %p70 = por %p68, %p69
      %s72 = sadd.s32 %s71, 1
      %p75 = scmp.eq.s32.totalorder %s16, 1
      %p76 = scmp.ne.s32.totalorder %s71, %s73
      %p77 = scmp.eq.s32.totalorder %s16, 0
      %p78 = por %p76, %p77
      %p79 = scmp.ne.s32.totalorder %s71, %s73
      %p80 = scmp.eq.s32.totalorder %s21, 1
      %p81 = por %p79, %p80
      %p82 = scmp.ne.s32.totalorder %s73, %s74
      %p83 = scmp.eq.s32.totalorder %s21, 0
      %p84 = por %p82, %p83
      %p85 = scmp.ne.s32.totalorder %s73, %s74
      %p86 = scmp.eq.s32.totalorder %s22, 1
      %p87 = por %p85, %p86
      %p89 = scmp.ne.s32.totalorder %s74, %s88
      %p90 = scmp.eq.s32.totalorder %s22, 0
      %p91 = por %p89, %p90
      %s92 = ssub.s32 %s16, %s23
      %p93 = scmp.eq.s32.totalorder %s92, 0
      %s95 = sadd.s32 %s94, 1
      %s96 = scalar_select %p93, %s94, %s95
      %p99 = pneg %p93
      %p100 = scmp.eq.s32.totalorder %s16, 1
      %p101 = por %p99, %p100
      %p102 = scmp.ne.s32.totalorder %s94, %s97
      %p103 = scmp.eq.s32.totalorder %s16, 0
      %p104 = por %p102, %p103
      %p105 = scmp.ne.s32.totalorder %s94, %s97
      %p106 = scmp.eq.s32.totalorder %s21, 1
      %p107 = por %p105, %p106
      %p108 = scmp.ne.s32.totalorder %s97, %s98
      %p109 = scmp.eq.s32.totalorder %s21, 0
      %p110 = por %p108, %p109
      %p111 = scmp.ne.s32.totalorder %s97, %s98
      %p112 = scmp.eq.s32.totalorder %s22, 1
      %p113 = por %p111, %p112
      %p115 = scmp.ne.s32.totalorder %s98, %s114
      %p116 = scmp.eq.s32.totalorder %s22, 0
      %p117 = por %p115, %p116
      %p118 = scmp.le.s32.totalorder 1, %s16
      %p119 = scmp.lt.s32.totalorder %s16, 3
      %p120 = pnand %p118, %p119
      %p121 = pneg %p120
      // Predicated region
      $region9: #{tpu_custom_call.1} parent=5 // pred_check
        _
      $region10: #{tpu_custom_call.1} parent=5 // pred_check_branch
        %123 = sbr.rel (%p120) target = $region12
      $region11: #{tpu_custom_call.1} parent=5 // pred_region
        %s124 = ssub.s32 %s16, 1
        // Predicated region
        $region13: #{tpu_custom_call.1} parent=11 // pred_check
          %p125 = pneg %p63
        $region14: #{tpu_custom_call.1} parent=11 // pred_check_branch
          %127 = sbr.rel (%p125) target = $region16
        $region15: #{tpu_custom_call.1} parent=11 // pred_region
          %s129 = ssub.s32 4096, 4096
          %130 = vsyncadd [#allocation6], %s129
          %s131 = sshll.u32 [#allocation5], 4
          %s132 = int_to_ptr.vmem [resolvable:$true] %s131
          %137 = dma.hbm_to_vmem [thread:$0]  %s1, 4096, %s132, [#allocation6], 256, 256, 16
        $region16: #{tpu_custom_call.1} parent=11 // pred_fallthru
          _
        // Predicated region
        $region17: #{tpu_custom_call.1} parent=11 // pred_check
          %p138 = pneg %p84
        $region18: #{tpu_custom_call.1} parent=11 // pred_check_branch
          %140 = sbr.rel (%p138) target = $region20
        $region19: #{tpu_custom_call.1} parent=11 // pred_region
          %s142 = ssub.s32 32, 32
          %143 = vsyncadd [#allocation6], %s142
          %s145 = sshll.u32 [#allocation7], 4
          %s146 = int_to_ptr.vmem [resolvable:$true] %s145
          %148 = dma.hbm_to_vmem [thread:$0]  %s2, 32, %s146, [#allocation6]
        $region20: #{tpu_custom_call.1} parent=11 // pred_fallthru
          _
      $region12: #{tpu_custom_call.1} parent=5 // pred_fallthru
        _
      %p149 = scmp.lt.s32.totalorder %s16, 2
      // Predicated region
      $region21: #{tpu_custom_call.1} parent=5 // pred_check
        %p150 = pneg %p149
      $region22: #{tpu_custom_call.1} parent=5 // pred_check_branch
        %152 = sbr.rel (%p150) target = $region24
      $region23: #{tpu_custom_call.1} parent=5 // pred_region
        // Predicated region
        $region25: #{tpu_custom_call.1} parent=23 // pred_check
          %p153 = pneg %p36
        $region26: #{tpu_custom_call.1} parent=23 // pred_check_branch
          %155 = sbr.rel (%p153) target = $region28
        $region27: #{tpu_custom_call.1} parent=23 // pred_region
          %s156 = sand.u32 %s26, 1
          %s157 = scalar_lea.sflag [#allocation3], %s156
          %s158 = sand.u32 %s26, 1
          %s159 = smul.addr %s158, 8
          %s160 = scalar_lea.vmem [#allocation2], %s159
          %s162 = ssub.s32 128, 128
          %163 = vsyncadd %s157, %s162
          %s164 = smul.addr %s16, 128
          %s165 = scalar_lea.hbm %s0, %s164
          %s167 = sshll.u32 %s160, 4
          %s168 = int_to_ptr.vmem [resolvable:$true] %s167
          %170 = dma.hbm_to_vmem [thread:$0]  %s165, 128, %s168, %s157
        $region28: #{tpu_custom_call.1} parent=23 // pred_fallthru
          _
      $region24: #{tpu_custom_call.1} parent=5 // pred_fallthru
        _
      %p171 = scmp.le.s32.totalorder 1, %s16
      %p172 = scmp.lt.s32.totalorder %s16, 3
      %p173 = pnand %p171, %p172
      %p174 = pneg %p173
      // Predicated region
      $region29: #{tpu_custom_call.1} parent=5 // pred_check
        _
      $region30: #{tpu_custom_call.1} parent=5 // pred_check_branch
        %176 = sbr.rel (%p173) target = $region32
      $region31: #{tpu_custom_call.1} parent=5 // pred_region
        %s177 = ssub.s32 %s16, 1
        %s178 = sand.u32 %s29, 1
        %s179 = scalar_lea.sflag [#allocation3], %s178
        %s180 = sand.u32 %s29, 1
        %s181 = smul.addr %s180, 8
        %s182 = scalar_lea.vmem [#allocation2], %s181
        // Predicated region
        $region33: #{tpu_custom_call.1} parent=31 // pred_check
          %p183 = pneg %p42
        $region34: #{tpu_custom_call.1} parent=31 // pred_check_branch
          %185 = sbr.rel (%p183) target = $region36
        $region35: #{tpu_custom_call.1} parent=31 // pred_region
          %186 = dma.done %s179, 128
        $region36: #{tpu_custom_call.1} parent=31 // pred_fallthru
          _
        // Predicated region
        $region37: #{tpu_custom_call.1} parent=31 // pred_check
          %p187 = pneg %p63
        $region38: #{tpu_custom_call.1} parent=31 // pred_check_branch
          %189 = sbr.rel (%p187) target = $region40
        $region39: #{tpu_custom_call.1} parent=31 // pred_region
          %190 = dma.done [#allocation6], 4096
        $region40: #{tpu_custom_call.1} parent=31 // pred_fallthru
          _
        // Predicated region
        $region41: #{tpu_custom_call.1} parent=31 // pred_check
          %p191 = pneg %p84
        $region42: #{tpu_custom_call.1} parent=31 // pred_check_branch
          %193 = sbr.rel (%p191) target = $region44
        $region43: #{tpu_custom_call.1} parent=31 // pred_region
          %194 = dma.done [#allocation6], 32
        $region44: #{tpu_custom_call.1} parent=31 // pred_fallthru
          _
        %s195 = sand.u32 %s29, 1
        %s196 = scalar_lea.sflag [#allocation3], %s195
        %s197 = sand.u32 %s29, 1
        %s198 = smul.addr %s197, 8
        %s199 = scalar_lea.vmem [#allocation2], %s198
        %p200 = pneg %p42
        %p201 = pneg %p39
        %p202 = pneg %p63
        %p203 = pneg %p60
        %p204 = pneg %p84
        %p205 = pneg %p81
        %p206 = pneg %p110
        %p207 = pneg %p107
        %s208 = sand.u32 %s97, 1
        %s209 = scalar_lea.sflag [#allocation4], %s208
        %s210 = sand.u32 %s97, 1
        %s211 = smul.addr %s210, 16
        %s212 = scalar_lea.vmem [#allocation8], %s211
        %v214 = vld [vmem:[%s182] sm:$0xff]
        %v215 = vpack.c.bf16 %v214, %v214
        %v216 = vld [vmem:[#allocation5] sm:$0xff]
        %v217 = vld [vmem:[#allocation5 + $0x8] sm:$0xff]
        %v218 = vld [vmem:[#allocation5 + $0x10] sm:$0xff]
        %v219 = vld [vmem:[#allocation5 + $0x18] sm:$0xff]
        %v220 = vld [vmem:[#allocation5 + $0x20] sm:$0xff]
        %v221 = vld [vmem:[#allocation5 + $0x28] sm:$0xff]
        %v222 = vld [vmem:[#allocation5 + $0x30] sm:$0xff]
        %v223 = vld [vmem:[#allocation5 + $0x38] sm:$0xff]
        %v224 = vld [vmem:[#allocation5 + $0x40] sm:$0xff]
        %v225 = vld [vmem:[#allocation5 + $0x48] sm:$0xff]
        %v226 = vld [vmem:[#allocation5 + $0x50] sm:$0xff]
        %v227 = vld [vmem:[#allocation5 + $0x58] sm:$0xff]
        %v228 = vld [vmem:[#allocation5 + $0x60] sm:$0xff]
        %v229 = vld [vmem:[#allocation5 + $0x68] sm:$0xff]
        %v230 = vld [vmem:[#allocation5 + $0x70] sm:$0xff]
        %v231 = vld [vmem:[#allocation5 + $0x78] sm:$0xff]
        %v232 = vld [vmem:[#allocation5 + $0x80] sm:$0xff]
        %v233 = vld [vmem:[#allocation5 + $0x88] sm:$0xff]
        %v234 = vld [vmem:[#allocation5 + $0x90] sm:$0xff]
        %v235 = vld [vmem:[#allocation5 + $0x98] sm:$0xff]
        %v236 = vld [vmem:[#allocation5 + $0xa0] sm:$0xff]
        %v237 = vld [vmem:[#allocation5 + $0xa8] sm:$0xff]
        %v238 = vld [vmem:[#allocation5 + $0xb0] sm:$0xff]
        %v239 = vld [vmem:[#allocation5 + $0xb8] sm:$0xff]
        %v240 = vld [vmem:[#allocation5 + $0xc0] sm:$0xff]
        %v241 = vld [vmem:[#allocation5 + $0xc8] sm:$0xff]
        %v242 = vld [vmem:[#allocation5 + $0xd0] sm:$0xff]
        %v243 = vld [vmem:[#allocation5 + $0xd8] sm:$0xff]
        %v244 = vld [vmem:[#allocation5 + $0xe0] sm:$0xff]
        %v245 = vld [vmem:[#allocation5 + $0xe8] sm:$0xff]
        %v246 = vld [vmem:[#allocation5 + $0xf0] sm:$0xff]
        %v247 = vld [vmem:[#allocation5 + $0xf8] sm:$0xff]
        %v248 = vpack.c.bf16 %v218, %v216
        %v249 = vpack.c.bf16 %v219, %v217
        %v250 = vpack.c.bf16 %v222, %v220
        %v251 = vpack.c.bf16 %v223, %v221
        %v252 = vpack.c.bf16 %v226, %v224
        %v253 = vpack.c.bf16 %v227, %v225
        %v254 = vpack.c.bf16 %v230, %v228
        %v255 = vpack.c.bf16 %v231, %v229
        %v256 = vpack.c.bf16 %v234, %v232
        %v257 = vpack.c.bf16 %v235, %v233
        %v258 = vpack.c.bf16 %v238, %v236
        %v259 = vpack.c.bf16 %v239, %v237
        %v260 = vpack.c.bf16 %v242, %v240
        %v261 = vpack.c.bf16 %v243, %v241
        %v262 = vpack.c.bf16 %v246, %v244
        %v263 = vpack.c.bf16 %v247, %v245
        %v264 = vld [vmem:[#allocation7] sm:$0x3]
        %v266 = vlaneseq
        %v267 = vshrl.u32 %v266, 7
        %v268 = vsub.s32 0, %v267
        %v269 = vrot.slane %v264, %v268
        %v270 = vlaneseq
        %v271 = vshrl.u32 %v270, 7
        %v272 = vsub.s32 1, %v271
        %v273 = vrot.slane %v264, %v272
        %276 = vmatprep.subr.bf16.mxu0 %v249
        %277 = vmatpush1.bf16.msra.mxu0 %v248
        %278 = vmatprep.subr.bf16.mxu0 %v251
        %279 = vmatpush1.bf16.msra.mxu0 %v250
        %280 = vmatprep.subr.bf16.mxu0 %v253
        %281 = vmatpush1.bf16.msra.mxu0 %v252
        %282 = vmatprep.subr.bf16.mxu0 %v255
        %283 = vmatpush1.bf16.msra.mxu0 %v254
        %284 = vmatprep.subr.bf16.mxu0 %v257
        %285 = vmatpush1.bf16.msra.mxu0 %v256
        %286 = vmatprep.subr.bf16.mxu0 %v259
        %287 = vmatpush1.bf16.msra.mxu0 %v258
        %288 = vmatprep.subr.bf16.mxu0 %v261
        %289 = vmatpush1.bf16.msra.mxu0 %v260
        %290 = vmatprep.subr.bf16.mxu0 %v263
        %291 = vmatpush1.bf16.msra.mxu0 %v262
        %292 = vmatprep.subr.bf16.mxu0 0
        %293 = vmatpush1.bf16.msra.mxu0 0
        %294 = vmatprep.subr.bf16.mxu0 0
        %295 = vmatpush1.bf16.msra.mxu0 0
        %296 = vmatprep.subr.bf16.mxu0 0
        %297 = vmatpush1.bf16.msra.mxu0 0
        %298 = vmatprep.subr.bf16.mxu0 0
        %299 = vmatpush1.bf16.msra.mxu0 0
        %300 = vmatprep.subr.bf16.mxu0 0
        %301 = vmatpush1.bf16.msra.mxu0 0
        %302 = vmatprep.subr.bf16.mxu0 0
        %303 = vmatpush1.bf16.msra.mxu0 0
        %304 = vmatprep.subr.bf16.mxu0 0
        %305 = vmatpush1.bf16.msra.mxu0 0
        %306 = vmatprep.subr.bf16.mxu0 0
        %307 = vmatpush1.bf16.msra.mxu0 0
        %308 = vmatprep.mubr.bf16.mxu0 0
        %309 = vmatmul.mubr.bf16.gmra.mrb[0].mxu0 %v215
        %v310 = vpop.f32.mrb[0].mxu0
        %v311 = vadd.f32 %v269, %v310
        %v312 = vpop.f32.mrb[0].mxu0
        %v313 = vadd.f32 %v273, %v312
        %v314 = vpop.f32.mrb[0].mxu0
        %v315 = vpop.f32.mrb[0].mxu0
        %316 = vdwg.mxu0
        %v317 = vmax.f32 %v311, %v313
        %318 = vmax.xlane.f32.xlu0 %v317
        %v319 = vpop.xlane.xlu0 %318
        %v320 = vsub.f32 %v311, %v319
        %v321 = vsub.f32 %v313, %v319
        %v322 = vmul.f32 %v320, 1.442695
        %v323 = vpow.pop %v322
        %v324 = vmul.f32 %v321, 1.442695
        %v325 = vpow.pop %v324
        %v326 = vadd.f32 %v323, %v325
        %327 = vadd.xlane.f32.xlu0 %v326
        %v328 = vpop.xlane.xlu0 %327
        %v329 = vlog2.pop %v328
        %v330 = vmul.f32 %v329, 0.6931472
        %v331 = vsub.f32 %v320, %v330
        %v332 = vsub.f32 %v321, %v330
        %333 = vst [vmem:[%s212] sm:$0xff] %v331
        %334 = vst [vmem:[%s212 + $0x8] sm:$0xff] %v332
        %s335 = sand.u32 %s97, 1
        %s336 = scalar_lea.sflag [#allocation4], %s335
        %s337 = sand.u32 %s97, 1
        %s338 = smul.addr %s337, 16
        %s339 = scalar_lea.vmem [#allocation8], %s338
        // Predicated region
        $region45: #{tpu_custom_call.1} parent=31 // pred_check
          %p340 = pneg %p107
        $region46: #{tpu_custom_call.1} parent=31 // pred_check_branch
          %342 = sbr.rel (%p340) target = $region48
        $region47: #{tpu_custom_call.1} parent=31 // pred_region
          %s344 = ssub.s32 256, 256
          %345 = vsyncadd %s336, %s344
          %s346 = smul.addr %s21, 2
          %s347 = smul.addr %s346, 128
          %s348 = scalar_lea.hbm %s3, %s347
          %s350 = sshll.u32 %s339, 4
          %s351 = int_to_ptr.vmem [resolvable:$true] %s350
          %353 = dma.vmem_to_hbm [thread:$0]  %s351, 256, %s348, %s336
        $region48: #{tpu_custom_call.1} parent=31 // pred_fallthru
          _
      $region32: #{tpu_custom_call.1} parent=5 // pred_fallthru
        _
      %p354 = scmp.le.s32.totalorder 2, %s16
      // Predicated region
      $region49: #{tpu_custom_call.1} parent=5 // pred_check
        %p355 = pneg %p354
      $region50: #{tpu_custom_call.1} parent=5 // pred_check_branch
        %357 = sbr.rel (%p355) target = $region52
      $region51: #{tpu_custom_call.1} parent=5 // pred_region
        %s358 = ssub.s32 %s16, 2
        // Predicated region
        $region53: #{tpu_custom_call.1} parent=51 // pred_check
          %p359 = pneg %p113
        $region54: #{tpu_custom_call.1} parent=51 // pred_check_branch
          %361 = sbr.rel (%p359) target = $region56
        $region55: #{tpu_custom_call.1} parent=51 // pred_region
          %s362 = sand.u32 %s98, 1
          %s363 = scalar_lea.sflag [#allocation4], %s362
          %s364 = sand.u32 %s98, 1
          %s365 = smul.addr %s364, 16
          %s366 = scalar_lea.vmem [#allocation8], %s365
          %367 = dma.done %s363, 256
        $region56: #{tpu_custom_call.1} parent=51 // pred_fallthru
          _
      $region52: #{tpu_custom_call.1} parent=5 // pred_fallthru
        _
    $region6: #{tpu_custom_call.1} parent=1 // loop_footer
      %s20 = sadd.s32 1, %s16
    $region7: #{tpu_custom_call.1} parent=1 // loop_footer_branch
      %15 = sbr.rel target = $region3
    $region8: #{tpu_custom_call.1} parent=1 // loop_exit
      _
    %368 = vsyncpa [#allocation3], 1
    %s369 = scalar_lea.sflag [#allocation3], 1
    %370 = vsyncpa %s369, 1
    %371 = vsyncpa [#allocation6], 1
    %372 = vsyncpa [#allocation4], 1
    %s373 = scalar_lea.sflag [#allocation4], 1
    %374 = vsyncpa %s373, 1

</llo_original>
